<compile_context>
chip_gen: v6e
topology: v6e:2x2x1
jax: 0.10.0
libtpu: 0.0.40
codegen_flags: <defaults>
</compile_context>

<pallas_src>
import functools

import jax
import jax.numpy as jnp
from jax import lax
from jax.experimental import pallas as pl
from jax.experimental.pallas import tpu as pltpu


LANE = 128
SUBLANE = 8
BF16_ROW_TILE = 16   # bf16 packs 16 rows per sublane tile

_VMEM = pl.BlockSpec(memory_space=pltpu.MemorySpace.VMEM)
_SMEM = pl.BlockSpec(memory_space=pltpu.MemorySpace.SMEM)


def _round_up(x, m):
    return (x + m - 1) // m * m


def _pad2(a, rows, cols):
    pr, pc = rows - a.shape[0], cols - a.shape[1]
    if pr == 0 and pc == 0:
        return a
    return jnp.pad(a, ((0, pr), (0, pc)))


# ---------------------------------------------------------------------------
# Fused kernel: online encoder -> pool -> predictor  +  target encoder.
# adj / x live in VMEM once and are shared by both branches; every
# intermediate (h, h_online, h_target's hidden state, z) stays in VMEM.
# ---------------------------------------------------------------------------

def _fused_views_kernel(batch_ref, adj_ref, x_ref,
                        w1_ref, b1_ref, w2_ref, b2_ref,            # online enc
                        w1t_ref, b1t_ref, w2t_ref, b2t_ref,        # target enc
                        wp_ref, bp_ref, gamma_ref, beta_ref,       # predictor
                        alpha_ref,                                 # PReLU (SMEM)
                        g_ref, pred_ref, target_ref):
    """Stand-in 2-layer GCN per branch:

         h        = relu(A @ (X @ W1) + b1)
         h_online = A @ (h @ W2) + b2
         g        = global_add_pool(h, batch)                      (online only)
         pred     = Dropout(PReLU(BatchNorm1d(Linear(h_online))))  (Dropout=eval)
         h_target = target-encoder second-layer output             (h discarded)

    MXU operands bf16, accumulation + element-wise math f32.
    """
    adj = adj_ref[...]                      # bf16, loaded once, reused 4x
    x = x_ref[...]                          # bf16

    # ---------------- online encoder ----------------
    t1 = jnp.dot(x, w1_ref[...], preferred_element_type=jnp.float32)
    h = jnp.maximum(
        jnp.dot(adj, t1.astype(jnp.bfloat16),
                preferred_element_type=jnp.float32) + b1_ref[...], 0.0)
    h_bf = h.astype(jnp.bfloat16)           # reused by layer 2 AND the pool
    t2 = jnp.dot(h_bf, w2_ref[...], preferred_element_type=jnp.float32)
    h_online = (jnp.dot(adj, t2.astype(jnp.bfloat16),
                        preferred_element_type=jnp.float32) + b2_ref[...])

    # ---------------- global_add_pool(h, batch) ----------------
    g_pad = g_ref.shape[0]                  # sublane-padded graph count
    n_nodes = h.shape[0]
    graph_ids = lax.broadcasted_iota(jnp.int32, (g_pad, n_nodes), 0)
    onehot = (graph_ids == batch_ref[...]).astype(jnp.bfloat16)   # exact 0/1
    g_ref[...] = jnp.dot(onehot, h_bf, preferred_element_type=jnp.float32)

    # ------- predictor: Linear -> BatchNorm1d (batch stats) -> PReLU -------
    z = (jnp.dot(h_online.astype(jnp.bfloat16), wp_ref[...],
                 preferred_element_type=jnp.float32) + bp_ref[...])
    mean = jnp.mean(z, axis=0, keepdims=True)
    var = jnp.mean((z - mean) ** 2, axis=0, keepdims=True)         # biased var
    zn = (z - mean) * lax.rsqrt(var + 1e-5)
    zn = zn * gamma_ref[...] + beta_ref[...]
    alpha = alpha_ref[0, 0]                                        # SMEM scalar
    pred_ref[...] = jnp.where(zn >= 0.0, zn, alpha * zn)           # Dropout = id

    # ---------------- target encoder (no_grad branch) ----------------
    t1t = jnp.dot(x, w1t_ref[...], preferred_element_type=jnp.float32)
    ht = jnp.maximum(
        jnp.dot(adj, t1t.astype(jnp.bfloat16),
                preferred_element_type=jnp.float32) + b1t_ref[...], 0.0)
    t2t = jnp.dot(ht.astype(jnp.bfloat16), w2t_ref[...],
                  preferred_element_type=jnp.float32)
    target_ref[...] = (jnp.dot(adj, t2t.astype(jnp.bfloat16),
                               preferred_element_type=jnp.float32) + b2t_ref[...])


# ---------------------------------------------------------------------------
# Wrapper (whole arrays fit VMEM at these sizes; see tiling TODO for large N)
# ---------------------------------------------------------------------------

def _cost_and_vmem(n, in_pad, h_pad, g_pad):
    bf, f32 = 2, 4
    enc_flops = (2 * n * in_pad * h_pad        # X @ W1
                 + 2 * n * n * h_pad           # A @ T1
                 + 2 * n * h_pad * h_pad       # h @ W2
                 + 2 * n * n * h_pad)          # A @ T2
    flops = (2 * enc_flops                     # online + target encoders
             + 2 * g_pad * n * h_pad           # pool one-hot matmul
             + 2 * n * h_pad * h_pad)          # predictor Linear
    in_bytes = (n * n * bf + n * in_pad * bf + n * f32          # adj, x, batch
                + 2 * (in_pad * h_pad * bf + h_pad * f32
                       + h_pad * h_pad * bf + h_pad * f32)      # both encoders
                + h_pad * h_pad * bf + 3 * h_pad * f32 + 4)     # predictor
    out_bytes = (g_pad + 2 * n) * h_pad * f32
    cost = pl.CostEstimate(flops=int(flops), transcendentals=int(h_pad),
                           bytes_accessed=int(in_bytes + out_bytes))
    # VMEM estimate: operands + outputs + f32 intermediates, 2x headroom.
    interm = 6 * n * h_pad * f32 + g_pad * n * bf
    est = 2 * (in_bytes + out_bytes + interm) + (4 << 20)
    # Raise past v5e's 16 MiB scoped default; stay under v7x's 64 MiB/TC physical.
    vmem_limit = int(min(max(est, 32 << 20), 56 << 20))
    return cost, vmem_limit


def _fused_views_call(batch_row, adj_bf, x_bf, online, target, pred, g_pad):
    n = adj_bf.shape[0]
    in_pad = online["w1"].shape[0]
    h_pad = online["w1"].shape[1]
    cost, vmem_limit = _cost_and_vmem(n, in_pad, h_pad, g_pad)

    return pl.pallas_call(
        _fused_views_kernel,
        out_shape=(jax.ShapeDtypeStruct((g_pad, h_pad), jnp.float32),
                   jax.ShapeDtypeStruct((n, h_pad), jnp.float32),
                   jax.ShapeDtypeStruct((n, h_pad), jnp.float32)),
        in_specs=[_VMEM] * 15 + [_SMEM],
        out_specs=(_VMEM, _VMEM, _VMEM),
        cost_estimate=cost,
        compiler_params=pltpu.CompilerParams(vmem_limit_bytes=vmem_limit),
    )(batch_row, adj_bf, x_bf,
      online["w1"], online["b1"], online["w2"], online["b2"],
      target["w1"], target["b1"], target["w2"], target["b2"],
      pred["wp"], pred["bp"], pred["gamma"], pred["beta"], pred["alpha"])


def _pad_encoder_params(enc, in_pad, h_pad):
    return {
        "w1": _pad2(enc["w1"], in_pad, h_pad).astype(jnp.bfloat16),
        "b1": _pad2(enc["b1"], 1, h_pad).astype(jnp.float32),
        "w2": _pad2(enc["w2"], h_pad, h_pad).astype(jnp.bfloat16),
        "b2": _pad2(enc["b2"], 1, h_pad).astype(jnp.float32),
    }


def _pad_predictor_params(pred, h_pad):
    return {
        "wp": _pad2(pred["wp"], h_pad, h_pad).astype(jnp.bfloat16),
        "bp": _pad2(pred["bp"], 1, h_pad).astype(jnp.float32),
        "gamma": _pad2(pred["gamma"], 1, h_pad).astype(jnp.float32),
        "beta": _pad2(pred["beta"], 1, h_pad).astype(jnp.float32),
        "alpha": pred["alpha"].astype(jnp.float32),     # (1,1) SMEM scalar
    }


@functools.partial(jax.jit, static_argnames=("n_graphs",))
def bgrl_encoder_forward(params, x, adj, batch_ids, n_graphs):
    """Mirrors Encoder.forward(x, edge_index, edge_weight, batch)."""
    n_nodes, in_dim = x.shape
    hidden = params["online"]["w1"].shape[1]
    # Node rows must be bf16-sublane-tile aligned (16 rows / tile); padding
    # them would corrupt BatchNorm batch statistics without masking.
    assert n_nodes % BF16_ROW_TILE == 0

    in_pad = _round_up(in_dim, LANE)
    h_pad = _round_up(hidden, LANE)
    g_pad = _round_up(n_graphs, SUBLANE)   # sublane-dense pooled output

    # Adjacency (the dominant HBM operand) arrives already bf16 from its
    # producer; only the small feature matrix is padded/cast here.
    adj_bf = adj if adj.dtype == jnp.bfloat16 else adj.astype(jnp.bfloat16)
    x_bf = _pad2(x, n_nodes, in_pad).astype(jnp.bfloat16)
    batch_row = batch_ids.reshape(1, n_nodes).astype(jnp.int32)

    online = _pad_encoder_params(params["online"], in_pad, h_pad)
    target = _pad_encoder_params(params["target"], in_pad, h_pad)
    pred_p = _pad_predictor_params(params["predictor"], h_pad)

    # Augmentations are identity stand-ins => the two views are byte-identical,
    # so the fused kernel runs once and results are reused for both views.
    # With real augmentors, call the fused kernel once per augmented view.
    g, h_pred, h_target = _fused_views_call(batch_row, adj_bf, x_bf,
                                            online, target, pred_p, g_pad)
    h_target = lax.stop_gradient(h_target)   # @torch.no_grad() branch

    # Slice padded sublanes / lanes back to the logical sizes.
    g = g[:n_graphs, :hidden]
    h_pred = h_pred[:, :hidden]
    h_target = h_target[:, :hidden]

    g1, g2 = g, g
    h1_pred, h2_pred = h_pred, h_pred
    h1_target, h2_target = h_target, h_target
    return g1, g2, h1_pred, h2_pred, h1_target, h2_target


# ---------------------------------------------------------------------------
# Deterministic parameter / input construction
# ---------------------------------------------------------------------------

def make_params(key, in_dim, hidden_dim):
    ks = jax.random.split(key, 4)
    scale1 = 1.0 / jnp.sqrt(in_dim)
    scale2 = 1.0 / jnp.sqrt(hidden_dim)
    enc = {
        "w1": jax.random.normal(ks[0], (in_dim, hidden_dim), jnp.float32) * scale1,
        "b1": jnp.zeros((1, hidden_dim), jnp.float32),
        "w2": jax.random.normal(ks[1], (hidden_dim, hidden_dim), jnp.float32) * scale2,
        "b2": jnp.zeros((1, hidden_dim), jnp.float32),
    }
    pred = {
        "wp": jax.random.normal(ks[2], (hidden_dim, hidden_dim), jnp.float32) * scale2,
        "bp": jax.random.normal(ks[3], (1, hidden_dim), jnp.float32) * scale2,
        "gamma": jnp.ones((1, hidden_dim), jnp.float32),   # BatchNorm1d weight init
        "beta": jnp.zeros((1, hidden_dim), jnp.float32),   # BatchNorm1d bias init
        "alpha": jnp.full((1, 1), 0.25, jnp.float32),      # PReLU default init
    }
    target = jax.tree_util.tree_map(lambda p: p, enc)      # deepcopy at init
    return {"online": enc, "target": target, "predictor": pred}


def edge_index_to_norm_adj(edge_index, n_nodes):
    """Dense symmetric-normalized adjacency with self loops, emitted in bf16
    (glue, not kernel) so no separate wrapper-side cast pass is needed."""
    src, dst = edge_index
    adj = jnp.zeros((n_nodes, n_nodes), jnp.float32)
    adj = adj.at[src, dst].set(1.0)
    adj = adj.at[dst, src].set(1.0)
    adj = adj + jnp.eye(n_nodes, dtype=jnp.float32)
    deg = jnp.sum(adj, axis=1)
    d_inv_sqrt = 1.0 / jnp.sqrt(jnp.maximum(deg, 1.0))
    return (adj * d_inv_sqrt[:, None] * d_inv_sqrt[None, :]).astype(jnp.bfloat16)


if __name__ == "__main__":
    N_NODES, IN_DIM, HIDDEN, N_GRAPHS = 16, 16, 32, 2

    key = jax.random.PRNGKey(0)
    k_x, k_e, k_p = jax.random.split(key, 3)

    x = jax.random.normal(k_x, (N_NODES, IN_DIM), jnp.float32)
    # Small deterministic edge set (ring + a few random chords).
    ring_src = jnp.arange(N_NODES, dtype=jnp.int32)
    ring_dst = (ring_src + 1) % N_NODES
    extra = jax.random.randint(k_e, (2, 8), 0, N_NODES, jnp.int32)
    edge_index = jnp.stack([jnp.concatenate([ring_src, extra[0]]),
                            jnp.concatenate([ring_dst, extra[1]])])
    adj = edge_index_to_norm_adj(edge_index, N_NODES)      # bf16 at the source

    batch_ids = jnp.concatenate([jnp.zeros(8, jnp.int32), jnp.ones(8, jnp.int32)])
    params = make_params(k_p, IN_DIM, HIDDEN)

    outs = bgrl_encoder_forward(params, x, adj, batch_ids, N_GRAPHS)
    outs = jax.block_until_ready(outs)

    g1, g2, h1_pred, h2_pred, h1_target, h2_target = outs
    assert g1.shape == (N_GRAPHS, HIDDEN) and g2.shape == (N_GRAPHS, HIDDEN)
    assert h1_pred.shape == (N_NODES, HIDDEN) and h2_pred.shape == (N_NODES, HIDDEN)
    assert h1_target.shape == (N_NODES, HIDDEN) and h2_target.shape == (N_NODES, HIDDEN)
    assert all(bool(jnp.all(jnp.isfinite(o))) for o in outs)

    print("KERNEL_OK")
</pallas_src>

<mosaic_0001>
module attributes {stable_mosaic.version = 11 : i64} {
  func.func @_fused_views_kernel(%arg0: memref<1x16xi32, #tpu.memory_space<vmem>>, %arg1: memref<16x16xbf16, #tpu.memory_space<vmem>>, %arg2: memref<16x128xbf16, #tpu.memory_space<vmem>>, %arg3: memref<128x128xbf16, #tpu.memory_space<vmem>>, %arg4: memref<1x128xf32, #tpu.memory_space<vmem>>, %arg5: memref<128x128xbf16, #tpu.memory_space<vmem>>, %arg6: memref<1x128xf32, #tpu.memory_space<vmem>>, %arg7: memref<128x128xbf16, #tpu.memory_space<vmem>>, %arg8: memref<1x128xf32, #tpu.memory_space<vmem>>, %arg9: memref<128x128xbf16, #tpu.memory_space<vmem>>, %arg10: memref<1x128xf32, #tpu.memory_space<vmem>>, %arg11: memref<128x128xbf16, #tpu.memory_space<vmem>>, %arg12: memref<1x128xf32, #tpu.memory_space<vmem>>, %arg13: memref<1x128xf32, #tpu.memory_space<vmem>>, %arg14: memref<1x128xf32, #tpu.memory_space<vmem>>, %arg15: memref<1x1xf32, #tpu.memory_space<smem>>, %arg16: memref<8x128xf32, #tpu.memory_space<vmem>>, %arg17: memref<16x128xf32, #tpu.memory_space<vmem>>, %arg18: memref<16x128xf32, #tpu.memory_space<vmem>>) attributes {dimension_semantics = [], scalar_prefetch = 0 : i64, scratch_operands = 0 : i64, tpu.core_type = #tpu.core_type<tc>} {
    %c0 = arith.constant 0 : index
    %c0_0 = arith.constant 0 : index
    %0 = vector.load %arg1[%c0, %c0_0] : memref<16x16xbf16, #tpu.memory_space<vmem>>, vector<16x16xbf16>
    %c0_1 = arith.constant 0 : index
    %c0_2 = arith.constant 0 : index
    %1 = vector.load %arg2[%c0_1, %c0_2] : memref<16x128xbf16, #tpu.memory_space<vmem>>, vector<16x128xbf16>
    %c0_3 = arith.constant 0 : index
    %c0_4 = arith.constant 0 : index
    %2 = vector.load %arg3[%c0_3, %c0_4] : memref<128x128xbf16, #tpu.memory_space<vmem>>, vector<128x128xbf16>
    %cst = arith.constant dense<0.000000e+00> : vector<16x128xf32>
    %3 = tpu.matmul %1, %2, %cst {dimension_numbers = #tpu.dot_dimension_numbers<[1], [0], [0], [1], [0, 0, 1, 1], [], []>} : vector<16x128xbf16>, vector<128x128xbf16>, vector<16x128xf32> -> vector<16x128xf32>
    %4 = arith.truncf %3 : vector<16x128xf32> to vector<16x128xbf16>
    %cst_5 = arith.constant dense<0.000000e+00> : vector<16x128xf32>
    %5 = tpu.matmul %0, %4, %cst_5 {dimension_numbers = #tpu.dot_dimension_numbers<[1], [0], [0], [1], [0, 0, 1, 1], [], []>} : vector<16x16xbf16>, vector<16x128xbf16>, vector<16x128xf32> -> vector<16x128xf32>
    %c0_6 = arith.constant 0 : index
    %c0_7 = arith.constant 0 : index
    %6 = vector.load %arg4[%c0_6, %c0_7] : memref<1x128xf32, #tpu.memory_space<vmem>>, vector<1x128xf32>
    %7 = vector.broadcast %6 : vector<1x128xf32> to vector<16x128xf32>
    %8 = arith.addf %5, %7 : vector<16x128xf32>
    %cst_8 = arith.constant 0.000000e+00 : f32
    %9 = vector.broadcast %cst_8 : f32 to vector<16x128xf32>
    %10 = arith.maximumf %8, %9 : vector<16x128xf32>
    %11 = arith.truncf %10 : vector<16x128xf32> to vector<16x128xbf16>
    %c0_9 = arith.constant 0 : index
    %c0_10 = arith.constant 0 : index
    %12 = vector.load %arg5[%c0_9, %c0_10] : memref<128x128xbf16, #tpu.memory_space<vmem>>, vector<128x128xbf16>
    %cst_11 = arith.constant dense<0.000000e+00> : vector<16x128xf32>
    %13 = tpu.matmul %11, %12, %cst_11 {dimension_numbers = #tpu.dot_dimension_numbers<[1], [0], [0], [1], [0, 0, 1, 1], [], []>} : vector<16x128xbf16>, vector<128x128xbf16>, vector<16x128xf32> -> vector<16x128xf32>
    %14 = arith.truncf %13 : vector<16x128xf32> to vector<16x128xbf16>
    %cst_12 = arith.constant dense<0.000000e+00> : vector<16x128xf32>
    %15 = tpu.matmul %0, %14, %cst_12 {dimension_numbers = #tpu.dot_dimension_numbers<[1], [0], [0], [1], [0, 0, 1, 1], [], []>} : vector<16x16xbf16>, vector<16x128xbf16>, vector<16x128xf32> -> vector<16x128xf32>
    %c0_13 = arith.constant 0 : index
    %c0_14 = arith.constant 0 : index
    %16 = vector.load %arg6[%c0_13, %c0_14] : memref<1x128xf32, #tpu.memory_space<vmem>>, vector<1x128xf32>
    %17 = vector.broadcast %16 : vector<1x128xf32> to vector<16x128xf32>
    %18 = arith.addf %15, %17 : vector<16x128xf32>
    %19 = tpu.iota {dimensions = array<i32: 0>} : vector<8x16xi32>
    %c0_15 = arith.constant 0 : index
    %c0_16 = arith.constant 0 : index
    %20 = vector.load %arg0[%c0_15, %c0_16] : memref<1x16xi32, #tpu.memory_space<vmem>>, vector<1x16xi32>
    %21 = vector.broadcast %20 : vector<1x16xi32> to vector<8x16xi32>
    %22 = arith.cmpi eq, %19, %21 : vector<8x16xi32>
    %23 = arith.extui %22 : vector<8x16xi1> to vector<8x16xi32>
    %24 = arith.sitofp %23 : vector<8x16xi32> to vector<8x16xf32>
    %25 = arith.truncf %24 : vector<8x16xf32> to vector<8x16xbf16>
    %cst_17 = arith.constant dense<0.000000e+00> : vector<8x128xf32>
    %26 = tpu.matmul %25, %11, %cst_17 {dimension_numbers = #tpu.dot_dimension_numbers<[1], [0], [0], [1], [0, 0, 1, 1], [], []>} : vector<8x16xbf16>, vector<16x128xbf16>, vector<8x128xf32> -> vector<8x128xf32>
    %c0_18 = arith.constant 0 : index
    %c0_19 = arith.constant 0 : index
    %27 = vector.load %arg16[%c0_18, %c0_19] : memref<8x128xf32, #tpu.memory_space<vmem>>, vector<8x128xf32>
    tpu.vector_store %arg16[%c0_18, %c0_19], %26 {strides = array<i32>} : memref<8x128xf32, #tpu.memory_space<vmem>>, vector<8x128xf32>,
    %28 = arith.truncf %18 : vector<16x128xf32> to vector<16x128xbf16>
    %c0_20 = arith.constant 0 : index
    %c0_21 = arith.constant 0 : index
    %29 = vector.load %arg11[%c0_20, %c0_21] : memref<128x128xbf16, #tpu.memory_space<vmem>>, vector<128x128xbf16>
    %cst_22 = arith.constant dense<0.000000e+00> : vector<16x128xf32>
    %30 = tpu.matmul %28, %29, %cst_22 {dimension_numbers = #tpu.dot_dimension_numbers<[1], [0], [0], [1], [0, 0, 1, 1], [], []>} : vector<16x128xbf16>, vector<128x128xbf16>, vector<16x128xf32> -> vector<16x128xf32>
    %c0_23 = arith.constant 0 : index
    %c0_24 = arith.constant 0 : index
    %31 = vector.load %arg12[%c0_23, %c0_24] : memref<1x128xf32, #tpu.memory_space<vmem>>, vector<1x128xf32>
    %32 = vector.broadcast %31 : vector<1x128xf32> to vector<16x128xf32>
    %33 = arith.addf %30, %32 : vector<16x128xf32>
    %cst_25 = arith.constant dense<0.000000e+00> : vector<128xf32>
    %34 = vector.multi_reduction <add>, %33, %cst_25 [0] : vector<16x128xf32> to vector<128xf32>
    %35 = vector.shape_cast %34 : vector<128xf32> to vector<1x128xf32>
    %cst_26 = arith.constant 1.600000e+01 : f32
    %36 = vector.broadcast %cst_26 : f32 to vector<1x128xf32>
    %37 = arith.divf %35, %36 : vector<1x128xf32>
    %38 = vector.broadcast %37 : vector<1x128xf32> to vector<16x128xf32>
    %39 = arith.subf %33, %38 : vector<16x128xf32>
    %40 = arith.mulf %39, %39 : vector<16x128xf32>
    %cst_27 = arith.constant dense<0.000000e+00> : vector<128xf32>
    %41 = vector.multi_reduction <add>, %40, %cst_27 [0] : vector<16x128xf32> to vector<128xf32>
    %42 = vector.shape_cast %41 : vector<128xf32> to vector<1x128xf32>
    %cst_28 = arith.constant 1.600000e+01 : f32
    %43 = vector.broadcast %cst_28 : f32 to vector<1x128xf32>
    %44 = arith.divf %42, %43 : vector<1x128xf32>
    %45 = vector.broadcast %37 : vector<1x128xf32> to vector<16x128xf32>
    %46 = arith.subf %33, %45 : vector<16x128xf32>
    %cst_29 = arith.constant 9.99999974E-6 : f32
    %47 = vector.broadcast %cst_29 : f32 to vector<1x128xf32>
    %48 = arith.addf %44, %47 : vector<1x128xf32>
    %49 = math.rsqrt %48 : vector<1x128xf32>
    %50 = vector.broadcast %49 : vector<1x128xf32> to vector<16x128xf32>
    %51 = arith.mulf %46, %50 : vector<16x128xf32>
    %c0_30 = arith.constant 0 : index
    %c0_31 = arith.constant 0 : index
    %52 = vector.load %arg13[%c0_30, %c0_31] : memref<1x128xf32, #tpu.memory_space<vmem>>, vector<1x128xf32>
    %53 = vector.broadcast %52 : vector<1x128xf32> to vector<16x128xf32>
    %54 = arith.mulf %51, %53 : vector<16x128xf32>
    %c0_32 = arith.constant 0 : index
    %c0_33 = arith.constant 0 : index
    %55 = vector.load %arg14[%c0_32, %c0_33] : memref<1x128xf32, #tpu.memory_space<vmem>>, vector<1x128xf32>
    %56 = vector.broadcast %55 : vector<1x128xf32> to vector<16x128xf32>
    %57 = arith.addf %54, %56 : vector<16x128xf32>
    %c0_34 = arith.constant 0 : index
    %c0_35 = arith.constant 0 : index
    %58 = memref.load %arg15[%c0_34, %c0_35] : memref<1x1xf32, #tpu.memory_space<smem>>
    %cst_36 = arith.constant 0.000000e+00 : f32
    %59 = vector.broadcast %cst_36 : f32 to vector<16x128xf32>
    %60 = arith.cmpf oge, %57, %59 : vector<16x128xf32>
    %61 = vector.broadcast %58 : f32 to vector<16x128xf32>
    %62 = arith.mulf %61, %57 : vector<16x128xf32>
    %63 = arith.select %60, %57, %62 : vector<16x128xi1>, vector<16x128xf32>
    %c0_37 = arith.constant 0 : index
    %c0_38 = arith.constant 0 : index
    %64 = vector.load %arg17[%c0_37, %c0_38] : memref<16x128xf32, #tpu.memory_space<vmem>>, vector<16x128xf32>
    tpu.vector_store %arg17[%c0_37, %c0_38], %63 {strides = array<i32>} : memref<16x128xf32, #tpu.memory_space<vmem>>, vector<16x128xf32>,
    %c0_39 = arith.constant 0 : index
    %c0_40 = arith.constant 0 : index
    %65 = vector.load %arg7[%c0_39, %c0_40] : memref<128x128xbf16, #tpu.memory_space<vmem>>, vector<128x128xbf16>
    %cst_41 = arith.constant dense<0.000000e+00> : vector<16x128xf32>
    %66 = tpu.matmul %1, %65, %cst_41 {dimension_numbers = #tpu.dot_dimension_numbers<[1], [0], [0], [1], [0, 0, 1, 1], [], []>} : vector<16x128xbf16>, vector<128x128xbf16>, vector<16x128xf32> -> vector<16x128xf32>
    %67 = arith.truncf %66 : vector<16x128xf32> to vector<16x128xbf16>
    %cst_42 = arith.constant dense<0.000000e+00> : vector<16x128xf32>
    %68 = tpu.matmul %0, %67, %cst_42 {dimension_numbers = #tpu.dot_dimension_numbers<[1], [0], [0], [1], [0, 0, 1, 1], [], []>} : vector<16x16xbf16>, vector<16x128xbf16>, vector<16x128xf32> -> vector<16x128xf32>
    %c0_43 = arith.constant 0 : index
    %c0_44 = arith.constant 0 : index
    %69 = vector.load %arg8[%c0_43, %c0_44] : memref<1x128xf32, #tpu.memory_space<vmem>>, vector<1x128xf32>
    %70 = vector.broadcast %69 : vector<1x128xf32> to vector<16x128xf32>
    %71 = arith.addf %68, %70 : vector<16x128xf32>
    %cst_45 = arith.constant 0.000000e+00 : f32
    %72 = vector.broadcast %cst_45 : f32 to vector<16x128xf32>
    %73 = arith.maximumf %71, %72 : vector<16x128xf32>
    %74 = arith.truncf %73 : vector<16x128xf32> to vector<16x128xbf16>
    %c0_46 = arith.constant 0 : index
    %c0_47 = arith.constant 0 : index
    %75 = vector.load %arg9[%c0_46, %c0_47] : memref<128x128xbf16, #tpu.memory_space<vmem>>, vector<128x128xbf16>
    %cst_48 = arith.constant dense<0.000000e+00> : vector<16x128xf32>
    %76 = tpu.matmul %74, %75, %cst_48 {dimension_numbers = #tpu.dot_dimension_numbers<[1], [0], [0], [1], [0, 0, 1, 1], [], []>} : vector<16x128xbf16>, vector<128x128xbf16>, vector<16x128xf32> -> vector<16x128xf32>
    %77 = arith.truncf %76 : vector<16x128xf32> to vector<16x128xbf16>
    %cst_49 = arith.constant dense<0.000000e+00> : vector<16x128xf32>
    %78 = tpu.matmul %0, %77, %cst_49 {dimension_numbers = #tpu.dot_dimension_numbers<[1], [0], [0], [1], [0, 0, 1, 1], [], []>} : vector<16x16xbf16>, vector<16x128xbf16>, vector<16x128xf32> -> vector<16x128xf32>
    %c0_50 = arith.constant 0 : index
    %c0_51 = arith.constant 0 : index
    %79 = vector.load %arg10[%c0_50, %c0_51] : memref<1x128xf32, #tpu.memory_space<vmem>>, vector<1x128xf32>
    %80 = vector.broadcast %79 : vector<1x128xf32> to vector<16x128xf32>
    %81 = arith.addf %78, %80 : vector<16x128xf32>
    %c0_52 = arith.constant 0 : index
    %c0_53 = arith.constant 0 : index
    %82 = vector.load %arg18[%c0_52, %c0_53] : memref<16x128xf32, #tpu.memory_space<vmem>>, vector<16x128xf32>
    tpu.vector_store %arg18[%c0_52, %c0_53], %81 {strides = array<i32>} : memref<16x128xf32, #tpu.memory_space<vmem>>, vector<16x128xf32>,
    return
  }
}

</mosaic_0001>

<llo_original>
// kernel: bgrl_encoder_forward.1
$region0: #{bgrl_encoder_forward.1}
  #allocation0 [shape = 'u32[]', space=smem, size = 0x4, offset = 0x4, fixed_abs, tag = 'smem constant byte address 0x4 - core index']
  #allocation1 [shape = 'u32[144,128]{1,0:T(1,128)}', space=vmem, size = 0x12000, scoped, tag = 'internal scratch']
  #allocation2 [shape = 'f32[1,1]{1,0:T(1,128)S(6)}', space=smem, size = 0x200, scoped, tag = 'scoped memory for bgrl_encoder_forward.1']
  %s0 = inlined_call_operand.vmem [shape: s32[1,16], index: 0, kind: input, shape index: {}]
  %s1 = inlined_call_operand.vmem [shape: bf16[16,16], index: 1, kind: input, shape index: {}]
  %s2 = inlined_call_operand.vmem [shape: bf16[16,128], index: 2, kind: input, shape index: {}]
  %s3 = inlined_call_operand.vmem [shape: bf16[128,128], index: 3, kind: input, shape index: {}]
  %s4 = inlined_call_operand.vmem [shape: f32[1,128], index: 4, kind: input, shape index: {}]
  %s5 = inlined_call_operand.vmem [shape: bf16[128,128], index: 5, kind: input, shape index: {}]
  %s6 = inlined_call_operand.vmem [shape: f32[1,128], index: 6, kind: input, shape index: {}]
  %s7 = inlined_call_operand.vmem [shape: bf16[128,128], index: 7, kind: input, shape index: {}]
  %s8 = inlined_call_operand.vmem [shape: f32[1,128], index: 8, kind: input, shape index: {}]
  %s9 = inlined_call_operand.vmem [shape: bf16[128,128], index: 9, kind: input, shape index: {}]
  %s10 = inlined_call_operand.vmem [shape: f32[1,128], index: 10, kind: input, shape index: {}]
  %s11 = inlined_call_operand.vmem [shape: bf16[128,128], index: 11, kind: input, shape index: {}]
  %s12 = inlined_call_operand.vmem [shape: f32[1,128], index: 12, kind: input, shape index: {}]
  %s13 = inlined_call_operand.vmem [shape: f32[1,128], index: 13, kind: input, shape index: {}]
  %s14 = inlined_call_operand.vmem [shape: f32[1,128], index: 14, kind: input, shape index: {}]
  %s15 = inlined_call_operand.<no memory space> [shape: f32[1,1], index: 15, kind: input, shape index: {}]
  %s16 = inlined_call_operand.vmem [shape: f32[8,128], index: 16, kind: output, shape index: {0}]
  %s17 = inlined_call_operand.vmem [shape: f32[16,128], index: 17, kind: output, shape index: {1}]
  %s18 = inlined_call_operand.vmem [shape: f32[16,128], index: 18, kind: output, shape index: {2}]
  %19 = xla_tuple %s16, %s17, %s18
  %s20 = sld [smem:[#allocation0]]
  $region90: #{bgrl_encoder_forward.1} parent=0
    _
  %s22 = ssub.s32 1, %s20
  %s23 = scalar_select 0, %s22, %s20
  %24 = sst [smem:[#allocation2]] %s15
  // Predicated region
  $region2: #{bgrl_encoder_forward.1} parent=0 // pred_check
    _
  $region3: #{bgrl_encoder_forward.1} parent=0 // pred_check_branch
    %26 = sbr.rel (0) target = $region5
  $region4: #{bgrl_encoder_forward.1} parent=0 // pred_region
    _
  $region5: #{bgrl_encoder_forward.1} parent=0 // pred_fallthru
    _
  // Predicated region
  $region6: #{bgrl_encoder_forward.1} parent=0 // pred_check
    _
  $region7: #{bgrl_encoder_forward.1} parent=0 // pred_check_branch
    %28 = sbr.rel (0) target = $region9
  $region8: #{bgrl_encoder_forward.1} parent=0 // pred_region
    _
  $region9: #{bgrl_encoder_forward.1} parent=0 // pred_fallthru
    _
  // Predicated region
  $region10: #{bgrl_encoder_forward.1} parent=0 // pred_check
    _
  $region11: #{bgrl_encoder_forward.1} parent=0 // pred_check_branch
    %30 = sbr.rel (0) target = $region13
  $region12: #{bgrl_encoder_forward.1} parent=0 // pred_region
    _
  $region13: #{bgrl_encoder_forward.1} parent=0 // pred_fallthru
    _
  // Predicated region
  $region14: #{bgrl_encoder_forward.1} parent=0 // pred_check
    _
  $region15: #{bgrl_encoder_forward.1} parent=0 // pred_check_branch
    %32 = sbr.rel (0) target = $region17
  $region16: #{bgrl_encoder_forward.1} parent=0 // pred_region
    _
  $region17: #{bgrl_encoder_forward.1} parent=0 // pred_fallthru
    _
  // Predicated region
  $region18: #{bgrl_encoder_forward.1} parent=0 // pred_check
    _
  $region19: #{bgrl_encoder_forward.1} parent=0 // pred_check_branch
    %34 = sbr.rel (0) target = $region21
  $region20: #{bgrl_encoder_forward.1} parent=0 // pred_region
    _
  $region21: #{bgrl_encoder_forward.1} parent=0 // pred_fallthru
    _
  // Predicated region
  $region22: #{bgrl_encoder_forward.1} parent=0 // pred_check
    _
  $region23: #{bgrl_encoder_forward.1} parent=0 // pred_check_branch
    %36 = sbr.rel (0) target = $region25
  $region24: #{bgrl_encoder_forward.1} parent=0 // pred_region
    _
  $region25: #{bgrl_encoder_forward.1} parent=0 // pred_fallthru
    _
  // Predicated region
  $region26: #{bgrl_encoder_forward.1} parent=0 // pred_check
    _
  $region27: #{bgrl_encoder_forward.1} parent=0 // pred_check_branch
    %38 = sbr.rel (0) target = $region29
  $region28: #{bgrl_encoder_forward.1} parent=0 // pred_region
    _
  $region29: #{bgrl_encoder_forward.1} parent=0 // pred_fallthru
    _
  // Predicated region
  $region30: #{bgrl_encoder_forward.1} parent=0 // pred_check
    _
  $region31: #{bgrl_encoder_forward.1} parent=0 // pred_check_branch
    %40 = sbr.rel (0) target = $region33
  $region32: #{bgrl_encoder_forward.1} parent=0 // pred_region
    _
  $region33: #{bgrl_encoder_forward.1} parent=0 // pred_fallthru
    _
  // Predicated region
  $region34: #{bgrl_encoder_forward.1} parent=0 // pred_check
    _
  $region35: #{bgrl_encoder_forward.1} parent=0 // pred_check_branch
    %42 = sbr.rel (0) target = $region37
  $region36: #{bgrl_encoder_forward.1} parent=0 // pred_region
    _
  $region37: #{bgrl_encoder_forward.1} parent=0 // pred_fallthru
    _
  // Predicated region
  $region38: #{bgrl_encoder_forward.1} parent=0 // pred_check
    _
  $region39: #{bgrl_encoder_forward.1} parent=0 // pred_check_branch
    %44 = sbr.rel (0) target = $region41
  $region40: #{bgrl_encoder_forward.1} parent=0 // pred_region
    _
  $region41: #{bgrl_encoder_forward.1} parent=0 // pred_fallthru
    _
  // Predicated region
  $region42: #{bgrl_encoder_forward.1} parent=0 // pred_check
    _
  $region43: #{bgrl_encoder_forward.1} parent=0 // pred_check_branch
    %46 = sbr.rel (0) target = $region45
  $region44: #{bgrl_encoder_forward.1} parent=0 // pred_region
    _
  $region45: #{bgrl_encoder_forward.1} parent=0 // pred_fallthru
    _
  // Predicated region
  $region46: #{bgrl_encoder_forward.1} parent=0 // pred_check
    _
  $region47: #{bgrl_encoder_forward.1} parent=0 // pred_check_branch
    %48 = sbr.rel (0) target = $region49
  $region48: #{bgrl_encoder_forward.1} parent=0 // pred_region
    _
  $region49: #{bgrl_encoder_forward.1} parent=0 // pred_fallthru
    _
  // Predicated region
  $region50: #{bgrl_encoder_forward.1} parent=0 // pred_check
    _
  $region51: #{bgrl_encoder_forward.1} parent=0 // pred_check_branch
    %50 = sbr.rel (0) target = $region53
  $region52: #{bgrl_encoder_forward.1} parent=0 // pred_region
    _
  $region53: #{bgrl_encoder_forward.1} parent=0 // pred_fallthru
    _
  // Predicated region
  $region54: #{bgrl_encoder_forward.1} parent=0 // pred_check
    _
  $region55: #{bgrl_encoder_forward.1} parent=0 // pred_check_branch
    %52 = sbr.rel (0) target = $region57
  $region56: #{bgrl_encoder_forward.1} parent=0 // pred_region
    _
  $region57: #{bgrl_encoder_forward.1} parent=0 // pred_fallthru
    _
  // Predicated region
  $region58: #{bgrl_encoder_forward.1} parent=0 // pred_check
    _
  $region59: #{bgrl_encoder_forward.1} parent=0 // pred_check_branch
    %54 = sbr.rel (0) target = $region61
  $region60: #{bgrl_encoder_forward.1} parent=0 // pred_region
    _
  $region61: #{bgrl_encoder_forward.1} parent=0 // pred_fallthru
    _
  // Predicated region
  $region62: #{bgrl_encoder_forward.1} parent=0 // pred_check
    _
  $region63: #{bgrl_encoder_forward.1} parent=0 // pred_check_branch
    %56 = sbr.rel (0) target = $region65
  $region64: #{bgrl_encoder_forward.1} parent=0 // pred_region
    _
  $region65: #{bgrl_encoder_forward.1} parent=0 // pred_fallthru
    _
  %v58 = vld [vmem:[%s1] sm:$0xf]
  %v59 = vld [vmem:[%s1 + $0x4] sm:$0xf]
  %v60 = vld [vmem:[%s2] sm:$0xf]
  %v61 = vld [vmem:[%s2 + $0x4] sm:$0xf]
  %v62 = vld [vmem:[%s3] sm:$0xf]
  %v63 = vld [vmem:[%s3 + $0x4] sm:$0xf]
  %v64 = vld [vmem:[%s3 + $0x8] sm:$0xf]
  %v65 = vld [vmem:[%s3 + $0xc] sm:$0xf]
  %v66 = vld [vmem:[%s3 + $0x10] sm:$0xf]
  %v67 = vld [vmem:[%s3 + $0x14] sm:$0xf]
  %v68 = vld [vmem:[%s3 + $0x18] sm:$0xf]
  %v69 = vld [vmem:[%s3 + $0x1c] sm:$0xf]
  %v70 = vld [vmem:[%s3 + $0x20] sm:$0xf]
  %v71 = vld [vmem:[%s3 + $0x24] sm:$0xf]
  %v72 = vld [vmem:[%s3 + $0x28] sm:$0xf]
  %v73 = vld [vmem:[%s3 + $0x2c] sm:$0xf]
  %v74 = vld [vmem:[%s3 + $0x30] sm:$0xf]
  %v75 = vld [vmem:[%s3 + $0x34] sm:$0xf]
  %v76 = vld [vmem:[%s3 + $0x38] sm:$0xf]
  %v77 = vld [vmem:[%s3 + $0x3c] sm:$0xf]
  %v80 = vunpack.c.l.b16 %v60
  %v81 = vunpack.c.l.b16 %v61
  %v82 = vpack.c.b16 %v81, %v80
  %v100 = vunpack.c.l.b16 %v62
  %v101 = vunpack.c.l.b16 %v63
  %v102 = vunpack.c.l.b16 %v64
  %v103 = vunpack.c.l.b16 %v65
  %v104 = vunpack.c.l.b16 %v66
  %v105 = vunpack.c.l.b16 %v67
  %v106 = vunpack.c.l.b16 %v68
  %v107 = vunpack.c.l.b16 %v69
  %v108 = vunpack.c.l.b16 %v70
  %v109 = vunpack.c.l.b16 %v71
  %v110 = vunpack.c.l.b16 %v72
  %v111 = vunpack.c.l.b16 %v73
  %v112 = vunpack.c.l.b16 %v74
  %v113 = vunpack.c.l.b16 %v75
  %v114 = vunpack.c.l.b16 %v76
  %v115 = vunpack.c.l.b16 %v77
  %v116 = vpack.c.b16 %v101, %v100
  %v117 = vpack.c.b16 %v103, %v102
  %v118 = vpack.c.b16 %v105, %v104
  %v119 = vpack.c.b16 %v107, %v106
  %v120 = vpack.c.b16 %v109, %v108
  %v121 = vpack.c.b16 %v111, %v110
  %v122 = vpack.c.b16 %v113, %v112
  %v123 = vpack.c.b16 %v115, %v114
  %132 = vmatprep.subr.bf16.mxu0 0
  %133 = vmatpush1.bf16.msra.mxu0 %v123
  %134 = vmatprep.subr.bf16.mxu0 0
  %135 = vmatpush1.bf16.msra.mxu0 %v122
  %136 = vmatprep.subr.bf16.mxu0 0
  %137 = vmatpush1.bf16.msra.mxu0 %v121
  %138 = vmatprep.subr.bf16.mxu0 0
  %139 = vmatpush1.bf16.msra.mxu0 %v120
  %140 = vmatprep.subr.bf16.mxu0 0
  %141 = vmatpush1.bf16.msra.mxu0 %v119
  %142 = vmatprep.subr.bf16.mxu0 0
  %143 = vmatpush1.bf16.msra.mxu0 %v118
  %144 = vmatprep.subr.bf16.mxu0 0
  %145 = vmatpush1.bf16.msra.mxu0 %v117
  %146 = vmatprep.subr.bf16.mxu0 0
  %147 = vmatpush1.bf16.msra.mxu0 %v116
  %148 = vmatprep.subr.bf16.mxu0 0
  %149 = vmatpush2.bf16.msra.mxu0 0
  %150 = vmatprep.subr.bf16.mxu0 0
  %151 = vmatpush2.bf16.msra.mxu0 0
  %152 = vmatprep.subr.bf16.mxu0 0
  %153 = vmatpush2.bf16.msra.mxu0 0
  %154 = vmatprep.subr.bf16.mxu0 0
  %155 = vmatpush2.bf16.msra.mxu0 0
  %156 = vmatprep.subr.bf16.mxu0 0
  %157 = vmatpush2.bf16.msra.mxu0 0
  %158 = vmatprep.subr.bf16.mxu0 0
  %159 = vmatpush2.bf16.msra.mxu0 0
  %160 = vmatprep.subr.bf16.mxu0 0
  %161 = vmatpush2.bf16.msra.mxu0 0
  %162 = vmatprep.subr.bf16.mxu0 0
  %163 = vmatpush2.bf16.msra.mxu0 0
  %164 = vmatprep.mubr.bf16.mxu0 0
  %165 = vmatmul.mubr.bf16.gmra.mxu0 %v82
  %v166 = vpop.f32.mrf.mxu0
  %v167 = vadd.f32 0.0, %v166
  %v168 = vpop.f32.mrf.mxu0
  %v169 = vpop.f32.mrf.mxu0
  %v170 = vadd.f32 0.0, %v169
  %v171 = vpop.f32.mrf.mxu0
  %172 = vdwg.mxu0
  %v173 = vpack.c.bf16 %v170, %v167
  %v174 = vld [vmem:[%s4] sm:$0x1]
  %v176 = vlaneseq
  %v177 = vshrl.u32 %v176, 7
  %v178 = vsub.s32 0, %v177
  %v179 = vrot.slane %v174, %v178
  %v183 = vunpack.c.l.b16 %v58
  %v184 = vunpack.c.l.b16 %v59
  %v185 = vpack.c.b16 %v184, %v183
  %vm186 = vcmask 130048
  %v188 = vsel %vm186, %v185, 0
  %190 = vmatprep.subr.bf16.mxu0 0
  %191 = vmatpush1.bf16.msra.mxu0 0
  %192 = vmatprep.subr.bf16.mxu0 0
  %193 = vmatpush1.bf16.msra.mxu0 0
  %194 = vmatprep.subr.bf16.mxu0 0
  %195 = vmatpush1.bf16.msra.mxu0 0
  %196 = vmatprep.subr.bf16.mxu0 0
  %197 = vmatpush1.bf16.msra.mxu0 0
  %198 = vmatprep.subr.bf16.mxu0 0
  %199 = vmatpush1.bf16.msra.mxu0 0
  %200 = vmatprep.subr.bf16.mxu0 0
  %201 = vmatpush1.bf16.msra.mxu0 0
  %202 = vmatprep.subr.bf16.mxu0 0
  %203 = vmatpush1.bf16.msra.mxu0 0
  %204 = vmatprep.subr.bf16.mxu0 0
  %205 = vmatpush1.bf16.msra.mxu0 %v173
  %206 = vmatprep.subr.bf16.mxu0 0
  %207 = vmatpush2.bf16.msra.mxu0 0
  %208 = vmatprep.subr.bf16.mxu0 0
  %209 = vmatpush2.bf16.msra.mxu0 0
  %210 = vmatprep.subr.bf16.mxu0 0
  %211 = vmatpush2.bf16.msra.mxu0 0
  %212 = vmatprep.subr.bf16.mxu0 0
  %213 = vmatpush2.bf16.msra.mxu0 0
  %214 = vmatprep.subr.bf16.mxu0 0
  %215 = vmatpush2.bf16.msra.mxu0 0
  %216 = vmatprep.subr.bf16.mxu0 0
  %217 = vmatpush2.bf16.msra.mxu0 0
  %218 = vmatprep.subr.bf16.mxu0 0
  %219 = vmatpush2.bf16.msra.mxu0 0
  %220 = vmatprep.subr.bf16.mxu0 0
  %221 = vmatpush2.bf16.msra.mxu0 0
  %222 = vmatprep.mubr.bf16.mxu0 0
  %223 = vmatmul.mubr.bf16.gmra.mxu0 %v188
  %v224 = vpop.f32.mrf.mxu0
  %v225 = vadd.f32 %v179, %v224
  %v226 = vpop.f32.mrf.mxu0
  %v227 = vpop.f32.mrf.mxu0
  %v228 = vadd.f32 %v179, %v227
  %v229 = vpop.f32.mrf.mxu0
  %230 = vdwg.mxu0
  %v231 = vmax.f32 %v225, 0.0
  %v232 = vmax.f32 %v228, 0.0
  %v233 = vpack.c.bf16 %v232, %v231
  %v234 = vld [vmem:[%s5] sm:$0xf]
  %v235 = vld [vmem:[%s5 + $0x4] sm:$0xf]
  %v236 = vld [vmem:[%s5 + $0x8] sm:$0xf]
  %v237 = vld [vmem:[%s5 + $0xc] sm:$0xf]
  %v238 = vld [vmem:[%s5 + $0x10] sm:$0xf]
  %v239 = vld [vmem:[%s5 + $0x14] sm:$0xf]
  %v240 = vld [vmem:[%s5 + $0x18] sm:$0xf]
  %v241 = vld [vmem:[%s5 + $0x1c] sm:$0xf]
  %v242 = vld [vmem:[%s5 + $0x20] sm:$0xf]
  %v243 = vld [vmem:[%s5 + $0x24] sm:$0xf]
  %v244 = vld [vmem:[%s5 + $0x28] sm:$0xf]
  %v245 = vld [vmem:[%s5 + $0x2c] sm:$0xf]
  %v246 = vld [vmem:[%s5 + $0x30] sm:$0xf]
  %v247 = vld [vmem:[%s5 + $0x34] sm:$0xf]
  %v248 = vld [vmem:[%s5 + $0x38] sm:$0xf]
  %v249 = vld [vmem:[%s5 + $0x3c] sm:$0xf]
  %v266 = vunpack.c.l.b16 %v234
  %v267 = vunpack.c.l.b16 %v235
  %v268 = vunpack.c.l.b16 %v236
  %v269 = vunpack.c.l.b16 %v237
  %v270 = vunpack.c.l.b16 %v238
  %v271 = vunpack.c.l.b16 %v239
  %v272 = vunpack.c.l.b16 %v240
  %v273 = vunpack.c.l.b16 %v241
  %v274 = vunpack.c.l.b16 %v242
  %v275 = vunpack.c.l.b16 %v243
  %v276 = vunpack.c.l.b16 %v244
  %v277 = vunpack.c.l.b16 %v245
  %v278 = vunpack.c.l.b16 %v246
  %v279 = vunpack.c.l.b16 %v247
  %v280 = vunpack.c.l.b16 %v248
  %v281 = vunpack.c.l.b16 %v249
  %v282 = vpack.c.b16 %v267, %v266
  %v283 = vpack.c.b16 %v269, %v268
  %v284 = vpack.c.b16 %v271, %v270
  %v285 = vpack.c.b16 %v273, %v272
  %v286 = vpack.c.b16 %v275, %v274
  %v287 = vpack.c.b16 %v277, %v276
  %v288 = vpack.c.b16 %v279, %v278
  %v289 = vpack.c.b16 %v281, %v280
  %298 = vmatprep.subr.bf16.mxu0 0
  %299 = vmatpush1.bf16.msra.mxu0 %v289
  %300 = vmatprep.subr.bf16.mxu0 0
  %301 = vmatpush1.bf16.msra.mxu0 %v288
  %302 = vmatprep.subr.bf16.mxu0 0
  %303 = vmatpush1.bf16.msra.mxu0 %v287
  %304 = vmatprep.subr.bf16.mxu0 0
  %305 = vmatpush1.bf16.msra.mxu0 %v286
  %306 = vmatprep.subr.bf16.mxu0 0
  %307 = vmatpush1.bf16.msra.mxu0 %v285
  %308 = vmatprep.subr.bf16.mxu0 0
  %309 = vmatpush1.bf16.msra.mxu0 %v284
  %310 = vmatprep.subr.bf16.mxu0 0
  %311 = vmatpush1.bf16.msra.mxu0 %v283
  %312 = vmatprep.subr.bf16.mxu0 0
  %313 = vmatpush1.bf16.msra.mxu0 %v282
  %314 = vmatprep.subr.bf16.mxu0 0
  %315 = vmatpush2.bf16.msra.mxu0 0
  %316 = vmatprep.subr.bf16.mxu0 0
  %317 = vmatpush2.bf16.msra.mxu0 0
  %318 = vmatprep.subr.bf16.mxu0 0
  %319 = vmatpush2.bf16.msra.mxu0 0
  %320 = vmatprep.subr.bf16.mxu0 0
  %321 = vmatpush2.bf16.msra.mxu0 0
  %322 = vmatprep.subr.bf16.mxu0 0
  %323 = vmatpush2.bf16.msra.mxu0 0
  %324 = vmatprep.subr.bf16.mxu0 0
  %325 = vmatpush2.bf16.msra.mxu0 0
  %326 = vmatprep.subr.bf16.mxu0 0
  %327 = vmatpush2.bf16.msra.mxu0 0
  %328 = vmatprep.subr.bf16.mxu0 0
  %329 = vmatpush2.bf16.msra.mxu0 0
  %330 = vmatprep.mubr.bf16.mxu0 0
  %331 = vmatmul.mubr.bf16.gmra.mxu0 %v233
  %v332 = vpop.f32.mrf.mxu0
  %v333 = vadd.f32 0.0, %v332
  %v334 = vpop.f32.mrf.mxu0
  %v335 = vpop.f32.mrf.mxu0
  %v336 = vadd.f32 0.0, %v335
  %v337 = vpop.f32.mrf.mxu0
  %338 = vdwg.mxu0
  %v339 = vpack.c.bf16 %v336, %v333
  %v340 = vld [vmem:[%s6] sm:$0x1]
  %v342 = vlaneseq
  %v343 = vshrl.u32 %v342, 7
  %v344 = vsub.s32 0, %v343
  %v345 = vrot.slane %v340, %v344
  %347 = vmatprep.subr.bf16.mxu0 0
  %348 = vmatpush1.bf16.msra.mxu0 0
  %349 = vmatprep.subr.bf16.mxu0 0
  %350 = vmatpush1.bf16.msra.mxu0 0
  %351 = vmatprep.subr.bf16.mxu0 0
  %352 = vmatpush1.bf16.msra.mxu0 0
  %353 = vmatprep.subr.bf16.mxu0 0
  %354 = vmatpush1.bf16.msra.mxu0 0
  %355 = vmatprep.subr.bf16.mxu0 0
  %356 = vmatpush1.bf16.msra.mxu0 0
  %357 = vmatprep.subr.bf16.mxu0 0
  %358 = vmatpush1.bf16.msra.mxu0 0
  %359 = vmatprep.subr.bf16.mxu0 0
  %360 = vmatpush1.bf16.msra.mxu0 0
  %361 = vmatprep.subr.bf16.mxu0 0
  %362 = vmatpush1.bf16.msra.mxu0 %v339
  %363 = vmatprep.subr.bf16.mxu0 0
  %364 = vmatpush2.bf16.msra.mxu0 0
  %365 = vmatprep.subr.bf16.mxu0 0
  %366 = vmatpush2.bf16.msra.mxu0 0
  %367 = vmatprep.subr.bf16.mxu0 0
  %368 = vmatpush2.bf16.msra.mxu0 0
  %369 = vmatprep.subr.bf16.mxu0 0
  %370 = vmatpush2.bf16.msra.mxu0 0
  %371 = vmatprep.subr.bf16.mxu0 0
  %372 = vmatpush2.bf16.msra.mxu0 0
  %373 = vmatprep.subr.bf16.mxu0 0
  %374 = vmatpush2.bf16.msra.mxu0 0
  %375 = vmatprep.subr.bf16.mxu0 0
  %376 = vmatpush2.bf16.msra.mxu0 0
  %377 = vmatprep.subr.bf16.mxu0 0
  %378 = vmatpush2.bf16.msra.mxu0 0
  %379 = vmatprep.mubr.bf16.mxu0 0
  %380 = vmatmul.mubr.bf16.gmra.mxu0 %v188
  %v381 = vpop.f32.mrf.mxu0
  %v382 = vadd.f32 %v345, %v381
  %v383 = vpop.f32.mrf.mxu0
  %v384 = vpop.f32.mrf.mxu0
  %v385 = vadd.f32 %v345, %v384
  %v386 = vpop.f32.mrf.mxu0
  %387 = vdwg.mxu0
  %v388 = vlaneseq
  %v389 = vshrl.u32 %v388, 7
  %v390 = vld [vmem:[%s0] sm:$0x1]
  %v391 = vlaneseq
  %v392 = vshrl.u32 %v391, 7
  %v393 = vsub.s32 0, %v392
  %v394 = vrot.slane %v390, %v393
  %vm395 = vcmp.eq.s32.totalorder %v389, %v394
  %v396 = vsel %vm395, 1, 0
  %v397 = vcvt.s32.f32 %v396
  %v398 = vpack.c.bf16 %v397, %v397
  %v400 = vsel %vm186, %v398, 0
  %402 = vmatprep.subr.bf16.mxu0 0
  %403 = vmatpush1.bf16.msra.mxu0 0
  %404 = vmatprep.subr.bf16.mxu0 0
  %405 = vmatpush1.bf16.msra.mxu0 0
  %406 = vmatprep.subr.bf16.mxu0 0
  %407 = vmatpush1.bf16.msra.mxu0 0
  %408 = vmatprep.subr.bf16.mxu0 0
  %409 = vmatpush1.bf16.msra.mxu0 0
  %410 = vmatprep.subr.bf16.mxu0 0
  %411 = vmatpush1.bf16.msra.mxu0 0
  %412 = vmatprep.subr.bf16.mxu0 0
  %413 = vmatpush1.bf16.msra.mxu0 0
  %414 = vmatprep.subr.bf16.mxu0 0
  %415 = vmatpush1.bf16.msra.mxu0 0
  %416 = vmatprep.subr.bf16.mxu0 0
  %417 = vmatpush1.bf16.msra.mxu0 %v233
  %418 = vmatprep.subr.bf16.mxu0 0
  %419 = vmatpush2.bf16.msra.mxu0 0
  %420 = vmatprep.subr.bf16.mxu0 0
  %421 = vmatpush2.bf16.msra.mxu0 0
  %422 = vmatprep.subr.bf16.mxu0 0
  %423 = vmatpush2.bf16.msra.mxu0 0
  %424 = vmatprep.subr.bf16.mxu0 0
  %425 = vmatpush2.bf16.msra.mxu0 0
  %426 = vmatprep.subr.bf16.mxu0 0
  %427 = vmatpush2.bf16.msra.mxu0 0
  %428 = vmatprep.subr.bf16.mxu0 0
  %429 = vmatpush2.bf16.msra.mxu0 0
  %430 = vmatprep.subr.bf16.mxu0 0
  %431 = vmatpush2.bf16.msra.mxu0 0
  %432 = vmatprep.subr.bf16.mxu0 0
  %433 = vmatpush2.bf16.msra.mxu0 0
  %434 = vmatprep.mubr.bf16.mxu0 0
  %435 = vmatmul.mubr.bf16.gmra.mxu0 %v400
  %v436 = vpop.f32.mrf.mxu0
  %v437 = vadd.f32 0.0, %v436
  %v438 = vpop.f32.mrf.mxu0
  %v439 = vpop.f32.mrf.mxu0
  %v440 = vpop.f32.mrf.mxu0
  %441 = vdwg.mxu0
  %442 = vst [vmem:[%s16] sm:$0xff] %v437
  %v443 = vpack.c.bf16 %v385, %v382
  %v444 = vld [vmem:[%s11] sm:$0xf]
  %v445 = vld [vmem:[%s11 + $0x4] sm:$0xf]
  %v446 = vld [vmem:[%s11 + $0x8] sm:$0xf]
  %v447 = vld [vmem:[%s11 + $0xc] sm:$0xf]
  %v448 = vld [vmem:[%s11 + $0x10] sm:$0xf]
  %v449 = vld [vmem:[%s11 + $0x14] sm:$0xf]
  %v450 = vld [vmem:[%s11 + $0x18] sm:$0xf]
  %v451 = vld [vmem:[%s11 + $0x1c] sm:$0xf]
  %v452 = vld [vmem:[%s11 + $0x20] sm:$0xf]
  %v453 = vld [vmem:[%s11 + $0x24] sm:$0xf]
  %v454 = vld [vmem:[%s11 + $0x28] sm:$0xf]
  %v455 = vld [vmem:[%s11 + $0x2c] sm:$0xf]
  %v456 = vld [vmem:[%s11 + $0x30] sm:$0xf]
  %v457 = vld [vmem:[%s11 + $0x34] sm:$0xf]
  %v458 = vld [vmem:[%s11 + $0x38] sm:$0xf]
  %v459 = vld [vmem:[%s11 + $0x3c] sm:$0xf]
  %v460 = vld [vmem:[%s12] sm:$0x1]
  %v462 = vlaneseq
  %v463 = vshrl.u32 %v462, 7
  %v464 = vsub.s32 0, %v463
  %v465 = vrot.slane %v460, %v464
  %v483 = vunpack.c.l.b16 %v444
  %v484 = vunpack.c.l.b16 %v445
  %v485 = vunpack.c.l.b16 %v446
  %v486 = vunpack.c.l.b16 %v447
  %v487 = vunpack.c.l.b16 %v448
  %v488 = vunpack.c.l.b16 %v449
  %v489 = vunpack.c.l.b16 %v450
  %v490 = vunpack.c.l.b16 %v451
  %v491 = vunpack.c.l.b16 %v452
  %v492 = vunpack.c.l.b16 %v453
  %v493 = vunpack.c.l.b16 %v454
  %v494 = vunpack.c.l.b16 %v455
  %v495 = vunpack.c.l.b16 %v456
  %v496 = vunpack.c.l.b16 %v457
  %v497 = vunpack.c.l.b16 %v458
  %v498 = vunpack.c.l.b16 %v459
  %v499 = vpack.c.b16 %v484, %v483
  %v500 = vpack.c.b16 %v486, %v485
  %v501 = vpack.c.b16 %v488, %v487
  %v502 = vpack.c.b16 %v490, %v489
  %v503 = vpack.c.b16 %v492, %v491
  %v504 = vpack.c.b16 %v494, %v493
  %v505 = vpack.c.b16 %v496, %v495
  %v506 = vpack.c.b16 %v498, %v497
  %515 = vmatprep.subr.bf16.mxu0 0
  %516 = vmatpush1.bf16.msra.mxu0 %v506
  %517 = vmatprep.subr.bf16.mxu0 0
  %518 = vmatpush1.bf16.msra.mxu0 %v505
  %519 = vmatprep.subr.bf16.mxu0 0
  %520 = vmatpush1.bf16.msra.mxu0 %v504
  %521 = vmatprep.subr.bf16.mxu0 0
  %522 = vmatpush1.bf16.msra.mxu0 %v503
  %523 = vmatprep.subr.bf16.mxu0 0
  %524 = vmatpush1.bf16.msra.mxu0 %v502
  %525 = vmatprep.subr.bf16.mxu0 0
  %526 = vmatpush1.bf16.msra.mxu0 %v501
  %527 = vmatprep.subr.bf16.mxu0 0
  %528 = vmatpush1.bf16.msra.mxu0 %v500
  %529 = vmatprep.subr.bf16.mxu0 0
  %530 = vmatpush1.bf16.msra.mxu0 %v499
  %531 = vmatprep.subr.bf16.mxu0 0
  %532 = vmatpush2.bf16.msra.mxu0 0
  %533 = vmatprep.subr.bf16.mxu0 0
  %534 = vmatpush2.bf16.msra.mxu0 0
  %535 = vmatprep.subr.bf16.mxu0 0
  %536 = vmatpush2.bf16.msra.mxu0 0
  %537 = vmatprep.subr.bf16.mxu0 0
  %538 = vmatpush2.bf16.msra.mxu0 0
  %539 = vmatprep.subr.bf16.mxu0 0
  %540 = vmatpush2.bf16.msra.mxu0 0
  %541 = vmatprep.subr.bf16.mxu0 0
  %542 = vmatpush2.bf16.msra.mxu0 0
  %543 = vmatprep.subr.bf16.mxu0 0
  %544 = vmatpush2.bf16.msra.mxu0 0
  %545 = vmatprep.subr.bf16.mxu0 0
  %546 = vmatpush2.bf16.msra.mxu0 0
  %547 = vmatprep.mubr.bf16.mxu0 0
  %548 = vmatmul.mubr.bf16.gmra.mxu0 %v443
  %v549 = vpop.f32.mrf.mxu0
  %v550 = vadd.f32 %v465, %v549
  %v551 = vpop.f32.mrf.mxu0
  %v552 = vpop.f32.mrf.mxu0
  %v553 = vadd.f32 %v465, %v552
  %v554 = vpop.f32.mrf.mxu0
  %555 = vdwg.mxu0
  %v556 = vadd.f32 %v550, %v553
  %v557 = vrot.slane %v556, 4
  %v558 = vadd.f32 %v556, %v557
  %v559 = vrot.slane %v558, 2
  %v560 = vadd.f32 %v558, %v559
  %v561 = vrot.slane %v560, 1
  %v562 = vadd.f32 %v560, %v561
  %v563 = vrcp.pop 16.0
  %v564 = vmul.f32 %v562, %v563
  %v565 = vsub.f32 %v550, %v564
  %v566 = vsub.f32 %v553, %v564
  %v567 = vmul.f32 %v565, %v565
  %v568 = vmul.f32 %v566, %v566
  %v569 = vadd.f32 %v567, %v568
  %v570 = vrot.slane %v569, 4
  %v571 = vadd.f32 %v569, %v570
  %v572 = vrot.slane %v571, 2
  %v573 = vadd.f32 %v571, %v572
  %v574 = vrot.slane %v573, 1
  %v575 = vadd.f32 %v573, %v574
  %v576 = vmul.f32 %v575, %v563
  %v577 = vadd.f32 %v576, 1e-05
  %v578 = vrsqrt.pop %v577
  %v579 = vmul.f32 %v565, %v578
  %v580 = vmul.f32 %v566, %v578
  %v581 = vld [vmem:[%s13] sm:$0x1]
  %v583 = vlaneseq
  %v584 = vshrl.u32 %v583, 7
  %v585 = vsub.s32 0, %v584
  %v586 = vrot.slane %v581, %v585
  %v588 = vmul.f32 %v579, %v586
  %v589 = vmul.f32 %v580, %v586
  %v590 = vld [vmem:[%s14] sm:$0x1]
  %v592 = vlaneseq
  %v593 = vshrl.u32 %v592, 7
  %v594 = vsub.s32 0, %v593
  %v595 = vrot.slane %v590, %v594
  %v597 = vadd.f32 %v588, %v595
  %v598 = vadd.f32 %v589, %v595
  %s599 = sld [smem:[#allocation2]]
  %vm600 = vcmp.ge.f32.partialorder %v597, 0.0
  %vm601 = vcmp.ge.f32.partialorder %v598, 0.0
  %v602 = vstv %s599
  %v603 = vmul.f32 %v602, %v597
  %v604 = vmul.f32 %v602, %v598
  %v605 = vsel %vm600, %v597, %v603
  %v606 = vsel %vm601, %v598, %v604
  %607 = vst [vmem:[%s17] sm:$0xff] %v605
  %608 = vst [vmem:[%s17 + $0x8] sm:$0xff] %v606
  %v609 = vld [vmem:[%s7] sm:$0xf]
  %v610 = vld [vmem:[%s7 + $0x4] sm:$0xf]
  %v611 = vld [vmem:[%s7 + $0x8] sm:$0xf]
  %v612 = vld [vmem:[%s7 + $0xc] sm:$0xf]
  %v613 = vld [vmem:[%s7 + $0x10] sm:$0xf]
  %v614 = vld [vmem:[%s7 + $0x14] sm:$0xf]
  %v615 = vld [vmem:[%s7 + $0x18] sm:$0xf]
  %v616 = vld [vmem:[%s7 + $0x1c] sm:$0xf]
  %v617 = vld [vmem:[%s7 + $0x20] sm:$0xf]
  %v618 = vld [vmem:[%s7 + $0x24] sm:$0xf]
  %v619 = vld [vmem:[%s7 + $0x28] sm:$0xf]
  %v620 = vld [vmem:[%s7 + $0x2c] sm:$0xf]
  %v621 = vld [vmem:[%s7 + $0x30] sm:$0xf]
  %v622 = vld [vmem:[%s7 + $0x34] sm:$0xf]
  %v623 = vld [vmem:[%s7 + $0x38] sm:$0xf]
  %v624 = vld [vmem:[%s7 + $0x3c] sm:$0xf]
  %v641 = vunpack.c.l.b16 %v609
  %v642 = vunpack.c.l.b16 %v610
  %v643 = vunpack.c.l.b16 %v611
  %v644 = vunpack.c.l.b16 %v612
  %v645 = vunpack.c.l.b16 %v613
  %v646 = vunpack.c.l.b16 %v614
  %v647 = vunpack.c.l.b16 %v615
  %v648 = vunpack.c.l.b16 %v616
  %v649 = vunpack.c.l.b16 %v617
  %v650 = vunpack.c.l.b16 %v618
  %v651 = vunpack.c.l.b16 %v619
  %v652 = vunpack.c.l.b16 %v620
  %v653 = vunpack.c.l.b16 %v621
  %v654 = vunpack.c.l.b16 %v622
  %v655 = vunpack.c.l.b16 %v623
  %v656 = vunpack.c.l.b16 %v624
  %v657 = vpack.c.b16 %v642, %v641
  %v658 = vpack.c.b16 %v644, %v643
  %v659 = vpack.c.b16 %v646, %v645
  %v660 = vpack.c.b16 %v648, %v647
  %v661 = vpack.c.b16 %v650, %v649
  %v662 = vpack.c.b16 %v652, %v651
  %v663 = vpack.c.b16 %v654, %v653
  %v664 = vpack.c.b16 %v656, %v655
  %673 = vmatprep.subr.bf16.mxu0 0
  %674 = vmatpush1.bf16.msra.mxu0 %v664
  %675 = vmatprep.subr.bf16.mxu0 0
  %676 = vmatpush1.bf16.msra.mxu0 %v663
  %677 = vmatprep.subr.bf16.mxu0 0
  %678 = vmatpush1.bf16.msra.mxu0 %v662
  %679 = vmatprep.subr.bf16.mxu0 0
  %680 = vmatpush1.bf16.msra.mxu0 %v661
  %681 = vmatprep.subr.bf16.mxu0 0
  %682 = vmatpush1.bf16.msra.mxu0 %v660
  %683 = vmatprep.subr.bf16.mxu0 0
  %684 = vmatpush1.bf16.msra.mxu0 %v659
  %685 = vmatprep.subr.bf16.mxu0 0
  %686 = vmatpush1.bf16.msra.mxu0 %v658
  %687 = vmatprep.subr.bf16.mxu0 0
  %688 = vmatpush1.bf16.msra.mxu0 %v657
  %689 = vmatprep.subr.bf16.mxu0 0
  %690 = vmatpush2.bf16.msra.mxu0 0
  %691 = vmatprep.subr.bf16.mxu0 0
  %692 = vmatpush2.bf16.msra.mxu0 0
  %693 = vmatprep.subr.bf16.mxu0 0
  %694 = vmatpush2.bf16.msra.mxu0 0
  %695 = vmatprep.subr.bf16.mxu0 0
  %696 = vmatpush2.bf16.msra.mxu0 0
  %697 = vmatprep.subr.bf16.mxu0 0
  %698 = vmatpush2.bf16.msra.mxu0 0
  %699 = vmatprep.subr.bf16.mxu0 0
  %700 = vmatpush2.bf16.msra.mxu0 0
  %701 = vmatprep.subr.bf16.mxu0 0
  %702 = vmatpush2.bf16.msra.mxu0 0
  %703 = vmatprep.subr.bf16.mxu0 0
  %704 = vmatpush2.bf16.msra.mxu0 0
  %705 = vmatprep.mubr.bf16.mxu0 0
  %706 = vmatmul.mubr.bf16.gmra.mxu0 %v82
  %v707 = vpop.f32.mrf.mxu0
  %v708 = vadd.f32 0.0, %v707
  %v709 = vpop.f32.mrf.mxu0
  %v710 = vpop.f32.mrf.mxu0
  %v711 = vadd.f32 0.0, %v710
  %v712 = vpop.f32.mrf.mxu0
  %713 = vdwg.mxu0
  %v714 = vpack.c.bf16 %v711, %v708
  %v715 = vld [vmem:[%s8] sm:$0x1]
  %v717 = vlaneseq
  %v718 = vshrl.u32 %v717, 7
  %v719 = vsub.s32 0, %v718
  %v720 = vrot.slane %v715, %v719
  %722 = vmatprep.subr.bf16.mxu0 0
  %723 = vmatpush1.bf16.msra.mxu0 0
  %724 = vmatprep.subr.bf16.mxu0 0
  %725 = vmatpush1.bf16.msra.mxu0 0
  %726 = vmatprep.subr.bf16.mxu0 0
  %727 = vmatpush1.bf16.msra.mxu0 0
  %728 = vmatprep.subr.bf16.mxu0 0
  %729 = vmatpush1.bf16.msra.mxu0 0
  %730 = vmatprep.subr.bf16.mxu0 0
  %731 = vmatpush1.bf16.msra.mxu0 0
  %732 = vmatprep.subr.bf16.mxu0 0
  %733 = vmatpush1.bf16.msra.mxu0 0
  %734 = vmatprep.subr.bf16.mxu0 0
  %735 = vmatpush1.bf16.msra.mxu0 0
  %736 = vmatprep.subr.bf16.mxu0 0
  %737 = vmatpush1.bf16.msra.mxu0 %v714
  %738 = vmatprep.subr.bf16.mxu0 0
  %739 = vmatpush2.bf16.msra.mxu0 0
  %740 = vmatprep.subr.bf16.mxu0 0
  %741 = vmatpush2.bf16.msra.mxu0 0
  %742 = vmatprep.subr.bf16.mxu0 0
  %743 = vmatpush2.bf16.msra.mxu0 0
  %744 = vmatprep.subr.bf16.mxu0 0
  %745 = vmatpush2.bf16.msra.mxu0 0
  %746 = vmatprep.subr.bf16.mxu0 0
  %747 = vmatpush2.bf16.msra.mxu0 0
  %748 = vmatprep.subr.bf16.mxu0 0
  %749 = vmatpush2.bf16.msra.mxu0 0
  %750 = vmatprep.subr.bf16.mxu0 0
  %751 = vmatpush2.bf16.msra.mxu0 0
  %752 = vmatprep.subr.bf16.mxu0 0
  %753 = vmatpush2.bf16.msra.mxu0 0
  %754 = vmatprep.mubr.bf16.mxu0 0
  %755 = vmatmul.mubr.bf16.gmra.mxu0 %v188
  %v756 = vpop.f32.mrf.mxu0
  %v757 = vadd.f32 %v720, %v756
  %v758 = vpop.f32.mrf.mxu0
  %v759 = vpop.f32.mrf.mxu0
  %v760 = vadd.f32 %v720, %v759
  %v761 = vpop.f32.mrf.mxu0
  %762 = vdwg.mxu0
  %v763 = vmax.f32 %v757, 0.0
  %v764 = vmax.f32 %v760, 0.0
  %v765 = vpack.c.bf16 %v764, %v763
  %v766 = vld [vmem:[%s9] sm:$0xf]
  %v767 = vld [vmem:[%s9 + $0x4] sm:$0xf]
  %v768 = vld [vmem:[%s9 + $0x8] sm:$0xf]
  %v769 = vld [vmem:[%s9 + $0xc] sm:$0xf]
  %v770 = vld [vmem:[%s9 + $0x10] sm:$0xf]
  %v771 = vld [vmem:[%s9 + $0x14] sm:$0xf]
  %v772 = vld [vmem:[%s9 + $0x18] sm:$0xf]
  %v773 = vld [vmem:[%s9 + $0x1c] sm:$0xf]
  %v774 = vld [vmem:[%s9 + $0x20] sm:$0xf]
  %v775 = vld [vmem:[%s9 + $0x24] sm:$0xf]
  %v776 = vld [vmem:[%s9 + $0x28] sm:$0xf]
  %v777 = vld [vmem:[%s9 + $0x2c] sm:$0xf]
  %v778 = vld [vmem:[%s9 + $0x30] sm:$0xf]
  %v779 = vld [vmem:[%s9 + $0x34] sm:$0xf]
  %v780 = vld [vmem:[%s9 + $0x38] sm:$0xf]
  %v781 = vld [vmem:[%s9 + $0x3c] sm:$0xf]
  %v798 = vunpack.c.l.b16 %v766
  %v799 = vunpack.c.l.b16 %v767
  %v800 = vunpack.c.l.b16 %v768
  %v801 = vunpack.c.l.b16 %v769
  %v802 = vunpack.c.l.b16 %v770
  %v803 = vunpack.c.l.b16 %v771
  %v804 = vunpack.c.l.b16 %v772
  %v805 = vunpack.c.l.b16 %v773
  %v806 = vunpack.c.l.b16 %v774
  %v807 = vunpack.c.l.b16 %v775
  %v808 = vunpack.c.l.b16 %v776
  %v809 = vunpack.c.l.b16 %v777
  %v810 = vunpack.c.l.b16 %v778
  %v811 = vunpack.c.l.b16 %v779
  %v812 = vunpack.c.l.b16 %v780
  %v813 = vunpack.c.l.b16 %v781
  %v814 = vpack.c.b16 %v799, %v798
  %v815 = vpack.c.b16 %v801, %v800
  %v816 = vpack.c.b16 %v803, %v802
  %v817 = vpack.c.b16 %v805, %v804
  %v818 = vpack.c.b16 %v807, %v806
  %v819 = vpack.c.b16 %v809, %v808
  %v820 = vpack.c.b16 %v811, %v810
  %v821 = vpack.c.b16 %v813, %v812
  %830 = vmatprep.subr.bf16.mxu0 0
  %831 = vmatpush1.bf16.msra.mxu0 %v821
  %832 = vmatprep.subr.bf16.mxu0 0
  %833 = vmatpush1.bf16.msra.mxu0 %v820
  %834 = vmatprep.subr.bf16.mxu0 0
  %835 = vmatpush1.bf16.msra.mxu0 %v819
  %836 = vmatprep.subr.bf16.mxu0 0
  %837 = vmatpush1.bf16.msra.mxu0 %v818
  %838 = vmatprep.subr.bf16.mxu0 0
  %839 = vmatpush1.bf16.msra.mxu0 %v817
  %840 = vmatprep.subr.bf16.mxu0 0
  %841 = vmatpush1.bf16.msra.mxu0 %v816
  %842 = vmatprep.subr.bf16.mxu0 0
  %843 = vmatpush1.bf16.msra.mxu0 %v815
  %844 = vmatprep.subr.bf16.mxu0 0
  %845 = vmatpush1.bf16.msra.mxu0 %v814
  %846 = vmatprep.subr.bf16.mxu0 0
  %847 = vmatpush2.bf16.msra.mxu0 0
  %848 = vmatprep.subr.bf16.mxu0 0
  %849 = vmatpush2.bf16.msra.mxu0 0
  %850 = vmatprep.subr.bf16.mxu0 0
  %851 = vmatpush2.bf16.msra.mxu0 0
  %852 = vmatprep.subr.bf16.mxu0 0
  %853 = vmatpush2.bf16.msra.mxu0 0
  %854 = vmatprep.subr.bf16.mxu0 0
  %855 = vmatpush2.bf16.msra.mxu0 0
  %856 = vmatprep.subr.bf16.mxu0 0
  %857 = vmatpush2.bf16.msra.mxu0 0
  %858 = vmatprep.subr.bf16.mxu0 0
  %859 = vmatpush2.bf16.msra.mxu0 0
  %860 = vmatprep.subr.bf16.mxu0 0
  %861 = vmatpush2.bf16.msra.mxu0 0
  %862 = vmatprep.mubr.bf16.mxu0 0
  %863 = vmatmul.mubr.bf16.gmra.mxu0 %v765
  %v864 = vpop.f32.mrf.mxu0
  %v865 = vadd.f32 0.0, %v864
  %v866 = vpop.f32.mrf.mxu0
  %v867 = vpop.f32.mrf.mxu0
  %v868 = vadd.f32 0.0, %v867
  %v869 = vpop.f32.mrf.mxu0
  %870 = vdwg.mxu0
  %v871 = vpack.c.bf16 %v868, %v865
  %v872 = vld [vmem:[%s10] sm:$0x1]
  %v874 = vlaneseq
  %v875 = vshrl.u32 %v874, 7
  %v876 = vsub.s32 0, %v875
  %v877 = vrot.slane %v872, %v876
  %879 = vmatprep.subr.bf16.mxu0 0
  %880 = vmatpush1.bf16.msra.mxu0 0
  %881 = vmatprep.subr.bf16.mxu0 0
  %882 = vmatpush1.bf16.msra.mxu0 0
  %883 = vmatprep.subr.bf16.mxu0 0
  %884 = vmatpush1.bf16.msra.mxu0 0
  %885 = vmatprep.subr.bf16.mxu0 0
  %886 = vmatpush1.bf16.msra.mxu0 0
  %887 = vmatprep.subr.bf16.mxu0 0
  %888 = vmatpush1.bf16.msra.mxu0 0
  %889 = vmatprep.subr.bf16.mxu0 0
  %890 = vmatpush1.bf16.msra.mxu0 0
  %891 = vmatprep.subr.bf16.mxu0 0
  %892 = vmatpush1.bf16.msra.mxu0 0
  %893 = vmatprep.subr.bf16.mxu0 0
  %894 = vmatpush1.bf16.msra.mxu0 %v871
  %895 = vmatprep.subr.bf16.mxu0 0
  %896 = vmatpush2.bf16.msra.mxu0 0
  %897 = vmatprep.subr.bf16.mxu0 0
  %898 = vmatpush2.bf16.msra.mxu0 0
  %899 = vmatprep.subr.bf16.mxu0 0
  %900 = vmatpush2.bf16.msra.mxu0 0
  %901 = vmatprep.subr.bf16.mxu0 0
  %902 = vmatpush2.bf16.msra.mxu0 0
  %903 = vmatprep.subr.bf16.mxu0 0
  %904 = vmatpush2.bf16.msra.mxu0 0
  %905 = vmatprep.subr.bf16.mxu0 0
  %906 = vmatpush2.bf16.msra.mxu0 0
  %907 = vmatprep.subr.bf16.mxu0 0
  %908 = vmatpush2.bf16.msra.mxu0 0
  %909 = vmatprep.subr.bf16.mxu0 0
  %910 = vmatpush2.bf16.msra.mxu0 0
  %911 = vmatprep.mubr.bf16.mxu0 0
  %912 = vmatmul.mubr.bf16.gmra.mxu0 %v188
  %v913 = vpop.f32.mrf.mxu0
  %v914 = vadd.f32 %v877, %v913
  %v915 = vpop.f32.mrf.mxu0
  %v916 = vpop.f32.mrf.mxu0
  %v917 = vadd.f32 %v877, %v916
  %v918 = vpop.f32.mrf.mxu0
  %919 = vdwg.mxu0
  %920 = vst [vmem:[%s18] sm:$0xff] %v914
  %921 = vst [vmem:[%s18 + $0x8] sm:$0xff] %v917
  // Predicated region
  $region66: #{bgrl_encoder_forward.1} parent=0 // pred_check
    _
  $region67: #{bgrl_encoder_forward.1} parent=0 // pred_check_branch
    %923 = sbr.rel (0) target = $region69
  $region68: #{bgrl_encoder_forward.1} parent=0 // pred_region
    _
  $region69: #{bgrl_encoder_forward.1} parent=0 // pred_fallthru
    _
  // Predicated region
  $region70: #{bgrl_encoder_forward.1} parent=0 // pred_check
    _
  $region71: #{bgrl_encoder_forward.1} parent=0 // pred_check_branch
    %925 = sbr.rel (0) target = $region73
  $region72: #{bgrl_encoder_forward.1} parent=0 // pred_region
    _
  $region73: #{bgrl_encoder_forward.1} parent=0 // pred_fallthru
    _
  // Predicated region
  $region74: #{bgrl_encoder_forward.1} parent=0 // pred_check
    _
  $region75: #{bgrl_encoder_forward.1} parent=0 // pred_check_branch
    %927 = sbr.rel (0) target = $region77
  $region76: #{bgrl_encoder_forward.1} parent=0 // pred_region
    _
  $region77: #{bgrl_encoder_forward.1} parent=0 // pred_fallthru
    _
  // Predicated region
  $region78: #{bgrl_encoder_forward.1} parent=0 // pred_check
    _
  $region79: #{bgrl_encoder_forward.1} parent=0 // pred_check_branch
    %929 = sbr.rel (0) target = $region81
  $region80: #{bgrl_encoder_forward.1} parent=0 // pred_region
    _
  $region81: #{bgrl_encoder_forward.1} parent=0 // pred_fallthru
    _
  // Predicated region
  $region82: #{bgrl_encoder_forward.1} parent=0 // pred_check
    _
  $region83: #{bgrl_encoder_forward.1} parent=0 // pred_check_branch
    %931 = sbr.rel (0) target = $region85
  $region84: #{bgrl_encoder_forward.1} parent=0 // pred_region
    _
  $region85: #{bgrl_encoder_forward.1} parent=0 // pred_fallthru
    _
  // Predicated region
  $region86: #{bgrl_encoder_forward.1} parent=0 // pred_check
    _
  $region87: #{bgrl_encoder_forward.1} parent=0 // pred_check_branch
    %933 = sbr.rel (0) target = $region89
  $region88: #{bgrl_encoder_forward.1} parent=0 // pred_region
    _
  $region89: #{bgrl_encoder_forward.1} parent=0 // pred_fallthru
    _

</llo_original>
